<compile_context>
chip_gen: v6e
topology: v6e:2x2x1
jax: 0.10.0
libtpu: 0.0.40
codegen_flags: <defaults>
</compile_context>

<pallas_src>
import math

import jax
import jax.numpy as jnp
from jax.experimental import pallas as pl
from jax.experimental.pallas import tpu as pltpu

D_MODEL = 32
HEADS = 8          # must be 8: grid_init in _reset_parameters hardcodes an 8-head pattern
POINTS = 1
LEVELS = 4
SPATIAL_SHAPES = ((8, 8), (4, 4), (2, 2), (1, 1))   # (H, W) per feature level


# ----------------------- Pallas kernel 1: fused 1x1 convs == matmul + bias -----------------------
def _pw_conv_kernel(x_ref, w_ref, b_ref, o_ref):
    o_ref[...] = (jnp.dot(x_ref[...], w_ref[...], preferred_element_type=jnp.float32)
                  + b_ref[...]).astype(o_ref.dtype)


def pw_conv(x2d, w, b):
    R, Cin = x2d.shape
    Cout = w.shape[1]
    return pl.pallas_call(
        _pw_conv_kernel,
        out_shape=jax.ShapeDtypeStruct((R, Cout), jnp.float32),
        grid=(1,),
        in_specs=[pl.BlockSpec((R, Cin), lambda i: (0, 0)),
                  pl.BlockSpec((Cin, Cout), lambda i: (0, 0)),
                  pl.BlockSpec((1, Cout), lambda i: (0, 0))],
        out_specs=pl.BlockSpec((R, Cout), lambda i: (0, 0)),
    )(x2d, w, b.reshape(1, Cout))


def pw_conv_ref(x2d, w, b):
    return jnp.dot(x2d, w, precision=jax.lax.Precision.HIGHEST) + b[None, :]


# ----- Pallas kernel 2: grid_sample + weighted level/point reduction + output conv + scale -----
def _make_sampling_kernel(spatial_shapes, level_offsets, M, F, P, Cm, S, Q):
    C = M * Cm

    def kernel(val_ref, gx_ref, gy_ref, wt_ref, wout_ref, bout_ref, scale_ref, o_ref):
        # Global flattened source index along lanes (0..S-1), computed ONCE for all heads.
        src = jax.lax.broadcasted_iota(jnp.int32, (Q, S), 1)
        acc = jnp.zeros((Q, C), jnp.float32)
        for m in range(M):
            # Dense bilinear sampling matrix for head m covering ALL source levels at once.
            A = jnp.zeros((Q, S), jnp.float32)
            for f in range(F):
                Hf, Wf = spatial_shapes[f]
                off = level_offsets[f]
                for p in range(P):
                    col = (m * F + f) * P + p
                    gx = gx_ref[0, :, col:col + 1]          # (Q, 1)
                    gy = gy_ref[0, :, col:col + 1]
                    wq = wt_ref[0, :, col:col + 1]          # softmaxed sampling weight
                    # align_corners=False pixel coords
                    ix = (gx + 1.0) * (0.5 * Wf) - 0.5
                    iy = (gy + 1.0) * (0.5 * Hf) - 0.5
                    x0f = jnp.floor(ix)
                    y0f = jnp.floor(iy)
                    wx1 = ix - x0f
                    wx0 = 1.0 - wx1
                    wy1 = iy - y0f
                    wy0 = 1.0 - wy1
                    x0 = x0f.astype(jnp.int32)
                    y0 = y0f.astype(jnp.int32)
                    for yc, xc, wc in ((y0, x0, wy0 * wx0), (y0, x0 + 1, wy0 * wx1),
                                       (y1 := y0 + 1, x0, wy1 * wx0), (y1, x0 + 1, wy1 * wx1)):
                        # One int compare per corner.  OOB corners are forced to the -1
                        # sentinel (never matches src >= 0) == padding_mode='zeros'.
                        valid = (xc >= 0) & (xc < Wf) & (yc >= 0) & (yc < Hf)
                        lin = jnp.where(valid, off + yc * Wf + xc, -1)       # (Q, 1) int32
                        A = A + jnp.where(src == lin, wc * wq, 0.0)
            vh = val_ref[0, :, m * Cm:(m + 1) * Cm]                          # (S, Cm)
            head = jnp.dot(A, vh, preferred_element_type=jnp.float32)        # (Q, Cm)
            wo = wout_ref[m * Cm:(m + 1) * Cm, :]                            # (Cm, C)
            acc = acc + jnp.dot(head, wo, preferred_element_type=jnp.float32)
        out = (acc + bout_ref[...]) * scale_ref[...]
        o_ref[0, :, :] = out.astype(o_ref.dtype)

    return kernel


def sampling_outconv(value, gx, gy, wts, out_w, out_b, scale, spatial_shapes, level_offsets):
    N, S, C = value.shape
    M, F, P = HEADS, LEVELS, POINTS
    Cm = C // M
    Q = gx.shape[1]
    MFP = M * F * P
    kernel = _make_sampling_kernel(tuple(spatial_shapes), tuple(level_offsets),
                                   M, F, P, Cm, S, Q)
    return pl.pallas_call(
        kernel,
        out_shape=jax.ShapeDtypeStruct((N, Q, C), jnp.float32),
        grid=(N,),
        in_specs=[pl.BlockSpec((1, S, C), lambda n: (n, 0, 0)),
                  pl.BlockSpec((1, Q, MFP), lambda n: (n, 0, 0)),
                  pl.BlockSpec((1, Q, MFP), lambda n: (n, 0, 0)),
                  pl.BlockSpec((1, Q, MFP), lambda n: (n, 0, 0)),
                  pl.BlockSpec((C, C), lambda n: (0, 0)),
                  pl.BlockSpec((1, C), lambda n: (0, 0)),
                  pl.BlockSpec((1, C), lambda n: (0, 0))],
        out_specs=pl.BlockSpec((1, Q, C), lambda n: (n, 0, 0)),
        compiler_params=pltpu.CompilerParams(dimension_semantics=("parallel",)),
    )(value, gx, gy, wts, out_w, out_b.reshape(1, C), scale.reshape(1, C))


def sampling_outconv_ref(value, gx, gy, wts, out_w, out_b, scale, spatial_shapes, level_offsets):
    """Pure-JAX gather-based grid_sample reference (validation only)."""
    N, S, C = value.shape
    M, F, P = HEADS, LEVELS, POINTS
    Cm = C // M
    Q = gx.shape[1]
    acc = jnp.zeros((N, Q, C), jnp.float32)
    for m in range(M):
        vh = value[:, :, m * Cm:(m + 1) * Cm]                              # (N, S, Cm)
        head = jnp.zeros((N, Q, Cm), jnp.float32)
        for f, (Hf, Wf) in enumerate(spatial_shapes):
            off = level_offsets[f]
            vf = vh[:, off:off + Hf * Wf, :]                               # (N, Sf, Cm)
            for p in range(P):
                col = (m * F + f) * P + p
                ix = (gx[:, :, col] + 1.0) * (0.5 * Wf) - 0.5              # (N, Q)
                iy = (gy[:, :, col] + 1.0) * (0.5 * Hf) - 0.5
                x0 = jnp.floor(ix).astype(jnp.int32)
                y0 = jnp.floor(iy).astype(jnp.int32)
                wx1 = ix - x0
                wx0 = 1.0 - wx1
                wy1 = iy - y0
                wy0 = 1.0 - wy1

                def tap(yc, xc, w):
                    valid = (yc >= 0) & (yc < Hf) & (xc >= 0) & (xc < Wf)
                    idx = jnp.clip(yc, 0, Hf - 1) * Wf + jnp.clip(xc, 0, Wf - 1)
                    v = jnp.take_along_axis(vf, idx[:, :, None], axis=1)   # (N, Q, Cm)
                    return v * (w * valid)[:, :, None]

                s = (tap(y0, x0, wy0 * wx0) + tap(y0, x0 + 1, wy0 * wx1)
                     + tap(y0 + 1, x0, wy1 * wx0) + tap(y0 + 1, x0 + 1, wy1 * wx1))
                head = head + wts[:, :, col][:, :, None] * s
        acc = acc + jnp.matmul(head, out_w[m * Cm:(m + 1) * Cm, :],
                               precision=jax.lax.Precision.HIGHEST)
    return (acc + out_b[None, None, :]) * scale[None, None, :]


# ------------------------------------- forward pass ----------------------------------------
def forward(params, x, pos, key_padding_mask, spatial_shapes, valid_sizes, valid_scales,
            use_pallas=True):
    N, C, S = x.shape
    M, P, F = HEADS, POINTS, LEVELS
    conv = pw_conv if use_pallas else pw_conv_ref
    sample = sampling_outconv if use_pallas else sampling_outconv_ref

    x_t = jnp.transpose(x, (0, 2, 1))                                   # (N, S, C)
    x_pos = x_t if pos is None else x_t + jnp.transpose(pos, (0, 2, 1))
    mask = key_padding_mask.reshape(N, S, 1)
    x_pos = jnp.where(mask, 0.0, x_pos)

    # ONE fused 1x1-conv kernel: rows = [x ; masked x_pos], cols = [value | locs | wt] = 128
    n_locs = M * F * P * 2
    n_wt = M * F * P
    w_fused = jnp.concatenate([params["value_w"], params["locs_w"], params["wt_w"]], axis=1)
    b_fused = jnp.concatenate([params["value_b"], params["locs_b"], params["wt_b"]], axis=0)
    rows = jnp.concatenate([x_t.reshape(N * S, C), x_pos.reshape(N * S, C)], axis=0)
    fused = conv(rows, w_fused, b_fused)                                # (2*N*S, 128)

    value = fused[:N * S, :C].reshape(N, S, C)
    value = jnp.where(mask, 0.0, value)
    offs = fused[N * S:, C:C + n_locs].reshape(N, S, M, F, P, 2)
    wts = fused[N * S:, C + n_locs:C + n_locs + n_wt].reshape(N, S, M, F * P)
    wts = jax.nn.softmax(wts, axis=-1).reshape(N, S, M * F * P)

    # level offsets into the flattened source/query axis
    level_offsets, cur = [], 0
    for (H_, W_) in spatial_shapes:
        level_offsets.append(cur)
        cur += H_ * W_

    # per-query pre-grid (pixel centers within the query's own level) + that level's size
    pre_list, den_list = [], []
    for lvl, (Hq, Wq) in enumerate(spatial_shapes):
        ys = jnp.arange(Hq, dtype=jnp.float32) + 0.5
        xs = jnp.arange(Wq, dtype=jnp.float32) + 0.5
        gy_, gx_ = jnp.meshgrid(ys, xs, indexing="ij")
        pre_list.append(jnp.stack([gx_, gy_], -1).reshape(Hq * Wq, 2))  # (x, y) last
        den_list.append(jnp.broadcast_to(valid_sizes[:, lvl:lvl + 1, :], (N, Hq * Wq, 2)))
    pre_grid = jnp.concatenate(pre_list, axis=0)                        # (S, 2)
    q_den = jnp.concatenate(den_list, axis=1)                           # (N, S, 2)

    # scale[n, q, f, :] = 2 * valid_scales[n, f, :] / valid_size_of_query_level[n, q, :]
    scale_qf = 2.0 * valid_scales[:, None, :, :] / q_den[:, :, None, :]     # (N, S, F, 2)
    sc6 = scale_qf[:, :, None, :, None, :]                                   # (N,S,1,F,1,2)
    grids = offs * sc6 + pre_grid[None, :, None, None, None, :] * sc6 - 1.0  # (N,S,M,F,P,2)
    gx = grids[..., 0].reshape(N, S, M * F * P)
    gy = grids[..., 1].reshape(N, S, M * F * P)

    # ONE sampling kernel over all 85 queries, all heads/levels, with fused out-conv + scale
    out = sample(value, gx, gy, wts, params["out_w"], params["out_b"], params["scale"],
                 spatial_shapes, level_offsets)                          # (N, S, C)
    return jnp.transpose(out, (0, 2, 1))                                 # (N, C, S)


# ------------------------------------ parameter init ---------------------------------------
def init_params(key):
    C, M, P, F = D_MODEL, HEADS, POINTS, LEVELS
    k1, k2 = jax.random.split(key)

    def xavier(k, cin, cout):
        bound = math.sqrt(6.0 / (cin + cout))
        return jax.random.uniform(k, (cin, cout), jnp.float32, -bound, bound)

    # sampling_locs bias: the hand-crafted 8-head grid pattern from _reset_parameters
    base = jnp.array([-1, -1, -1, 0, -1, 1, 0, -1, 0, 1, 1, -1, 1, 0, 1, 1],
                     dtype=jnp.float32).reshape(M, 1, 1, 2)
    grid_init = jnp.tile(base, (1, F, P, 1))
    grid_init = grid_init * jnp.arange(1, P + 1, dtype=jnp.float32).reshape(1, 1, P, 1)

    return dict(
        value_w=xavier(k1, C, C), value_b=jnp.zeros((C,), jnp.float32),
        out_w=xavier(k2, C, C), out_b=jnp.zeros((C,), jnp.float32),
        locs_w=jnp.zeros((C, M * F * P * 2), jnp.float32),
        locs_b=grid_init.reshape(-1),
        wt_w=jnp.zeros((C, M * F * P), jnp.float32),
        wt_b=jnp.zeros((M * F * P,), jnp.float32),
        scale=jnp.ones((C,), jnp.float32),
    )


if __name__ == "__main__":
    key = jax.random.PRNGKey(0)
    kp, kx, kpos = jax.random.split(key, 3)
    params = init_params(kp)

    N, C = 2, D_MODEL
    S = sum(h * w for h, w in SPATIAL_SHAPES)          # 64 + 16 + 4 + 1 = 85
    x = jax.random.normal(kx, (N, C, S), jnp.float32)
    pos = 0.1 * jax.random.normal(kpos, (N, C, S), jnp.float32)
    key_padding_mask = jnp.zeros((N, S), dtype=bool).at[1, 60:64].set(True)
    valid_sizes = jnp.tile(
        jnp.array([[w, h] for (h, w) in SPATIAL_SHAPES], jnp.float32)[None], (N, 1, 1))
    valid_scales = jnp.ones((N, LEVELS, 2), jnp.float32)

    out = forward(params, x, pos, key_padding_mask, SPATIAL_SHAPES,
                  valid_sizes, valid_scales, use_pallas=True)
    out = jax.block_until_ready(out)

    # pure-JAX (gather-based, HIGHEST-precision) reference of the same forward
    ref = forward(params, x, pos, key_padding_mask, SPATIAL_SHAPES,
                  valid_sizes, valid_scales, use_pallas=False)

    assert out.shape == (N, C, S)
    assert bool(jnp.all(jnp.isfinite(out)))
    max_err = float(jnp.max(jnp.abs(out - ref)))
    assert max_err < 5e-3, f"mismatch vs reference: {max_err}"
    print("KERNEL_OK")
</pallas_src>

<mosaic_0001>
module attributes {stable_mosaic.version = 11 : i64} {
  func.func @_pw_conv_kernel(%arg0: i32, %arg1: memref<340x32xf32, #tpu.memory_space<vmem>>, %arg2: memref<32x128xf32, #tpu.memory_space<vmem>>, %arg3: memref<1x128xf32, #tpu.memory_space<vmem>>, %arg4: memref<340x128xf32, #tpu.memory_space<vmem>>) attributes {dimension_semantics = [#tpu.dimension_semantics<arbitrary>], iteration_bounds = array<i64: 1>, scalar_prefetch = 0 : i64, scratch_operands = 0 : i64, tpu.core_type = #tpu.core_type<tc>, window_params = [{pipeline_mode = #tpu.pipeline_mode<synchronous>, transform_indices = @transform_0, window_bounds = array<i64: 340, 32>}, {pipeline_mode = #tpu.pipeline_mode<synchronous>, transform_indices = @transform_1, window_bounds = array<i64: 32, 128>}, {pipeline_mode = #tpu.pipeline_mode<synchronous>, transform_indices = @transform_2, window_bounds = array<i64: 1, 128>}, {pipeline_mode = #tpu.pipeline_mode<synchronous>, transform_indices = @transform_3, window_bounds = array<i64: 340, 128>}]} {
    %c0 = arith.constant 0 : index
    %c0_0 = arith.constant 0 : index
    %0 = vector.load %arg1[%c0, %c0_0] : memref<340x32xf32, #tpu.memory_space<vmem>>, vector<340x32xf32>
    %c0_1 = arith.constant 0 : index
    %c0_2 = arith.constant 0 : index
    %1 = vector.load %arg2[%c0_1, %c0_2] : memref<32x128xf32, #tpu.memory_space<vmem>>, vector<32x128xf32>
    %cst = arith.constant dense<0.000000e+00> : vector<340x128xf32>
    %2 = tpu.matmul %0, %1, %cst {dimension_numbers = #tpu.dot_dimension_numbers<[1], [0], [0], [1], [0, 0, 1, 1], [], []>} : vector<340x32xf32>, vector<32x128xf32>, vector<340x128xf32> -> vector<340x128xf32>
    %c0_3 = arith.constant 0 : index
    %c0_4 = arith.constant 0 : index
    %3 = vector.load %arg3[%c0_3, %c0_4] : memref<1x128xf32, #tpu.memory_space<vmem>>, vector<1x128xf32>
    %4 = vector.broadcast %3 : vector<1x128xf32> to vector<340x128xf32>
    %5 = arith.addf %2, %4 : vector<340x128xf32>
    %c0_5 = arith.constant 0 : index
    %c0_6 = arith.constant 0 : index
    %6 = vector.load %arg4[%c0_5, %c0_6] : memref<340x128xf32, #tpu.memory_space<vmem>>, vector<340x128xf32>
    tpu.vector_store %arg4[%c0_5, %c0_6], %5 {strides = array<i32>} : memref<340x128xf32, #tpu.memory_space<vmem>>, vector<340x128xf32>,
    return
  }
  func.func @transform_0(%arg0: i32) -> (i32, i32) {
    %c0_i32 = arith.constant 0 : i32
    %c0_i32_0 = arith.constant 0 : i32
    %c0_i32_1 = arith.constant 0 : i32
    return %c0_i32, %c0_i32_0 : i32, i32
  }
  func.func @transform_1(%arg0: i32) -> (i32, i32) {
    %c0_i32 = arith.constant 0 : i32
    %c0_i32_0 = arith.constant 0 : i32
    %c0_i32_1 = arith.constant 0 : i32
    return %c0_i32, %c0_i32_0 : i32, i32
  }
  func.func @transform_2(%arg0: i32) -> (i32, i32) {
    %c0_i32 = arith.constant 0 : i32
    %c0_i32_0 = arith.constant 0 : i32
    %c0_i32_1 = arith.constant 0 : i32
    return %c0_i32, %c0_i32_0 : i32, i32
  }
  func.func @transform_3(%arg0: i32) -> (i32, i32) {
    %c0_i32 = arith.constant 0 : i32
    %c0_i32_0 = arith.constant 0 : i32
    %c0_i32_1 = arith.constant 0 : i32
    return %c0_i32, %c0_i32_0 : i32, i32
  }
}

</mosaic_0001>

<llo_original>
// kernel: tpu_custom_call.1
$region0: #{tpu_custom_call.1}
  #allocation0 [shape = 'u32[]', space=smem, size = 0x4, offset = 0x4, fixed_abs, tag = 'smem constant byte address 0x4 - core index']
  #allocation1 [shape = 'u32[144,128]{1,0:T(1,128)}', space=vmem, size = 0x12000, scoped, tag = 'internal scratch']
  %s0 = inlined_call_operand.vmem [shape: f32[340,32], index: 0, kind: input, shape index: {}]
  %s1 = inlined_call_operand.vmem [shape: f32[32,128], index: 1, kind: input, shape index: {}]
  %s2 = inlined_call_operand.vmem [shape: f32[1,128], index: 2, kind: input, shape index: {}]
  %s3 = inlined_call_operand.hbm [shape: f32[340,128], index: 3, kind: output, shape index: {}]
  %s4 = sld [smem:[#allocation0]]
  $region22: #{tpu_custom_call.1} parent=0
    _
  %s6 = ssub.s32 1, %s4
  %s7 = scalar_select 0, %s6, %s4
  $region1: #{tpu_custom_call.1} parent=0
    #allocation2 [shape = 'u8[176128]{0}', space=vmem, size = 0x2b000, scoped, tag = 'output window, operand 0, single buffered']
    #allocation3 [shape = 's32[1]{0}', space=sflag, size = 0x4, scoped, tag = 'scoped memory for tpu_custom_call.1']
    %8 = vsyncpa [#allocation3], 0
    // Predicated region
    $region2: #{tpu_custom_call.1} parent=1 // pred_check
      _
    $region3: #{tpu_custom_call.1} parent=1 // pred_check_branch
      %10 = sbr.rel (0) target = $region5
    $region4: #{tpu_custom_call.1} parent=1 // pred_region
      _
    $region5: #{tpu_custom_call.1} parent=1 // pred_fallthru
      _
    // Predicated region
    $region6: #{tpu_custom_call.1} parent=1 // pred_check
      _
    $region7: #{tpu_custom_call.1} parent=1 // pred_check_branch
      %12 = sbr.rel (0) target = $region9
    $region8: #{tpu_custom_call.1} parent=1 // pred_region
      _
    $region9: #{tpu_custom_call.1} parent=1 // pred_fallthru
      _
    // Predicated region
    $region10: #{tpu_custom_call.1} parent=1 // pred_check
      _
    $region11: #{tpu_custom_call.1} parent=1 // pred_check_branch
      %14 = sbr.rel (0) target = $region13
    $region12: #{tpu_custom_call.1} parent=1 // pred_region
      _
    $region13: #{tpu_custom_call.1} parent=1 // pred_fallthru
      _
    %v15 = vld [vmem:[%s0] sm:$0xff]
    %v16 = vld [vmem:[%s0 + $0x8] sm:$0xff]
    %v17 = vld [vmem:[%s0 + $0x10] sm:$0xff]
    %v18 = vld [vmem:[%s0 + $0x18] sm:$0xff]
    %v19 = vld [vmem:[%s0 + $0x20] sm:$0xff]
    %v20 = vld [vmem:[%s0 + $0x28] sm:$0xff]
    %v21 = vld [vmem:[%s0 + $0x30] sm:$0xff]
    %v22 = vld [vmem:[%s0 + $0x38] sm:$0xff]
    %v23 = vld [vmem:[%s0 + $0x40] sm:$0xff]
    %v24 = vld [vmem:[%s0 + $0x48] sm:$0xff]
    %v25 = vld [vmem:[%s0 + $0x50] sm:$0xff]
    %v26 = vld [vmem:[%s0 + $0x58] sm:$0xff]
    %v27 = vld [vmem:[%s0 + $0x60] sm:$0xff]
    %v28 = vld [vmem:[%s0 + $0x68] sm:$0xff]
    %v29 = vld [vmem:[%s0 + $0x70] sm:$0xff]
    %v30 = vld [vmem:[%s0 + $0x78] sm:$0xff]
    %v31 = vld [vmem:[%s0 + $0x80] sm:$0xff]
    %v32 = vld [vmem:[%s0 + $0x88] sm:$0xff]
    %v33 = vld [vmem:[%s0 + $0x90] sm:$0xff]
    %v34 = vld [vmem:[%s0 + $0x98] sm:$0xff]
    %v35 = vld [vmem:[%s0 + $0xa0] sm:$0xff]
    %v36 = vld [vmem:[%s0 + $0xa8] sm:$0xff]
    %v37 = vld [vmem:[%s0 + $0xb0] sm:$0xff]
    %v38 = vld [vmem:[%s0 + $0xb8] sm:$0xff]
    %v39 = vld [vmem:[%s0 + $0xc0] sm:$0xff]
    %v40 = vld [vmem:[%s0 + $0xc8] sm:$0xff]
    %v41 = vld [vmem:[%s0 + $0xd0] sm:$0xff]
    %v42 = vld [vmem:[%s0 + $0xd8] sm:$0xff]
    %v43 = vld [vmem:[%s0 + $0xe0] sm:$0xff]
    %v44 = vld [vmem:[%s0 + $0xe8] sm:$0xff]
    %v45 = vld [vmem:[%s0 + $0xf0] sm:$0xff]
    %v46 = vld [vmem:[%s0 + $0xf8] sm:$0xff]
    %v47 = vld [vmem:[%s0 + $0x100] sm:$0xff]
    %v48 = vld [vmem:[%s0 + $0x108] sm:$0xff]
    %v49 = vld [vmem:[%s0 + $0x110] sm:$0xff]
    %v50 = vld [vmem:[%s0 + $0x118] sm:$0xff]
    %v51 = vld [vmem:[%s0 + $0x120] sm:$0xff]
    %v52 = vld [vmem:[%s0 + $0x128] sm:$0xff]
    %v53 = vld [vmem:[%s0 + $0x130] sm:$0xff]
    %v54 = vld [vmem:[%s0 + $0x138] sm:$0xff]
    %v55 = vld [vmem:[%s0 + $0x140] sm:$0xff]
    %v56 = vld [vmem:[%s0 + $0x148] sm:$0xff]
    %v57 = vld [vmem:[%s0 + $0x150] sm:$0xf]
    %v58 = vld [vmem:[%s1] sm:$0xff]
    %v59 = vld [vmem:[%s1 + $0x8] sm:$0xff]
    %v60 = vld [vmem:[%s1 + $0x10] sm:$0xff]
    %v61 = vld [vmem:[%s1 + $0x18] sm:$0xff]
    %v62 = vld [vmem:[%s2] sm:$0x1]
    %v64 = vlaneseq
    %v65 = vshrl.u32 %v64, 7
    %v66 = vsub.s32 0, %v65
    %v67 = vrot.slane %v62, %v66
    %vm69 = vcmask 261120
    %v71 = vsel %vm69, %v15, 0
    %v74 = vsel %vm69, %v16, 0
    %v77 = vsel %vm69, %v17, 0
    %v80 = vsel %vm69, %v18, 0
    %v83 = vsel %vm69, %v19, 0
    %v86 = vsel %vm69, %v20, 0
    %v89 = vsel %vm69, %v21, 0
    %v92 = vsel %vm69, %v22, 0
    %v95 = vsel %vm69, %v23, 0
    %v98 = vsel %vm69, %v24, 0
    %v101 = vsel %vm69, %v25, 0
    %v104 = vsel %vm69, %v26, 0
    %v107 = vsel %vm69, %v27, 0
    %v110 = vsel %vm69, %v28, 0
    %v113 = vsel %vm69, %v29, 0
    %v116 = vsel %vm69, %v30, 0
    %v119 = vsel %vm69, %v31, 0
    %v122 = vsel %vm69, %v32, 0
    %v125 = vsel %vm69, %v33, 0
    %v128 = vsel %vm69, %v34, 0
    %v131 = vsel %vm69, %v35, 0
    %v134 = vsel %vm69, %v36, 0
    %v137 = vsel %vm69, %v37, 0
    %v140 = vsel %vm69, %v38, 0
    %v143 = vsel %vm69, %v39, 0
    %v146 = vsel %vm69, %v40, 0
    %v149 = vsel %vm69, %v41, 0
    %v152 = vsel %vm69, %v42, 0
    %v155 = vsel %vm69, %v43, 0
    %v158 = vsel %vm69, %v44, 0
    %v161 = vsel %vm69, %v45, 0
    %v164 = vsel %vm69, %v46, 0
    %v167 = vsel %vm69, %v47, 0
    %v170 = vsel %vm69, %v48, 0
    %v173 = vsel %vm69, %v49, 0
    %v176 = vsel %vm69, %v50, 0
    %v179 = vsel %vm69, %v51, 0
    %v182 = vsel %vm69, %v52, 0
    %v185 = vsel %vm69, %v53, 0
    %v188 = vsel %vm69, %v54, 0
    %v191 = vsel %vm69, %v55, 0
    %v194 = vsel %vm69, %v56, 0
    %v197 = vsel %vm69, %v57, 0
    %199 = vmatprep.subr.mxu0 0.0
    %200 = vmatpush1.msra.mxu0 0.0
    %201 = vmatprep.subr.mxu0 0.0
    %202 = vmatpush1.msra.mxu0 0.0
    %203 = vmatprep.subr.mxu0 0.0
    %204 = vmatpush1.msra.mxu0 0.0
    %205 = vmatprep.subr.mxu0 0.0
    %206 = vmatpush1.msra.mxu0 0.0
    %207 = vmatprep.subr.mxu0 0.0
    %208 = vmatpush1.msra.mxu0 0.0
    %209 = vmatprep.subr.mxu0 0.0
    %210 = vmatpush1.msra.mxu0 0.0
    %211 = vmatprep.subr.mxu0 0.0
    %212 = vmatpush1.msra.mxu0 0.0
    %213 = vmatprep.subr.mxu0 0.0
    %214 = vmatpush1.msra.mxu0 0.0
    %215 = vmatprep.subr.mxu0 0.0
    %216 = vmatpush1.msra.mxu0 0.0
    %217 = vmatprep.subr.mxu0 0.0
    %218 = vmatpush1.msra.mxu0 0.0
    %219 = vmatprep.subr.mxu0 0.0
    %220 = vmatpush1.msra.mxu0 0.0
    %221 = vmatprep.subr.mxu0 0.0
    %222 = vmatpush1.msra.mxu0 0.0
    %223 = vmatprep.subr.mxu0 0.0
    %224 = vmatpush1.msra.mxu0 %v61
    %225 = vmatprep.subr.mxu0 0.0
    %226 = vmatpush1.msra.mxu0 %v60
    %227 = vmatprep.subr.mxu0 0.0
    %228 = vmatpush1.msra.mxu0 %v59
    %229 = vmatprep.subr.mxu0 0.0
    %230 = vmatpush1.msra.mxu0 %v58
    %231 = vmatprep.subr.mxu0 0.0
    %232 = vmatpush2.msra.mxu0 0.0
    %233 = vmatprep.subr.mxu0 0.0
    %234 = vmatpush2.msra.mxu0 0.0
    %235 = vmatprep.subr.mxu0 0.0
    %236 = vmatpush2.msra.mxu0 0.0
    %237 = vmatprep.subr.mxu0 0.0
    %238 = vmatpush2.msra.mxu0 0.0
    %239 = vmatprep.subr.mxu0 0.0
    %240 = vmatpush2.msra.mxu0 0.0
    %241 = vmatprep.subr.mxu0 0.0
    %242 = vmatpush2.msra.mxu0 0.0
    %243 = vmatprep.subr.mxu0 0.0
    %244 = vmatpush2.msra.mxu0 0.0
    %245 = vmatprep.subr.mxu0 0.0
    %246 = vmatpush2.msra.mxu0 0.0
    %247 = vmatprep.subr.mxu0 0.0
    %248 = vmatpush2.msra.mxu0 0.0
    %249 = vmatprep.subr.mxu0 0.0
    %250 = vmatpush2.msra.mxu0 0.0
    %251 = vmatprep.subr.mxu0 0.0
    %252 = vmatpush2.msra.mxu0 0.0
    %253 = vmatprep.subr.mxu0 0.0
    %254 = vmatpush2.msra.mxu0 0.0
    %255 = vmatprep.subr.mxu0 0.0
    %256 = vmatpush2.msra.mxu0 0.0
    %257 = vmatprep.subr.mxu0 0.0
    %258 = vmatpush2.msra.mxu0 0.0
    %259 = vmatprep.subr.mxu0 0.0
    %260 = vmatpush2.msra.mxu0 0.0
    %261 = vmatprep.subr.mxu0 0.0
    %262 = vmatpush2.msra.mxu0 0.0
    %263 = vmatprep.mubr.f32.mxu0 0.0
    %264 = vmatmul.mubr.f32.gmra.mxu0 %v71
    %v265 = vpop.f32.mrf.mxu0
    %v266 = vadd.f32 %v67, %v265
    %v267 = vpop.f32.mrf.mxu0
    %268 = vmatprep.mubr.f32.mxu0 0.0
    %269 = vmatmul.mubr.f32.gmra.mxu0 %v74
    %v270 = vpop.f32.mrf.mxu0
    %v271 = vadd.f32 %v67, %v270
    %v272 = vpop.f32.mrf.mxu0
    %273 = vmatprep.mubr.f32.mxu0 0.0
    %274 = vmatmul.mubr.f32.gmra.mxu0 %v77
    %v275 = vpop.f32.mrf.mxu0
    %v276 = vadd.f32 %v67, %v275
    %v277 = vpop.f32.mrf.mxu0
    %278 = vmatprep.mubr.f32.mxu0 0.0
    %279 = vmatmul.mubr.f32.gmra.mxu0 %v80
    %v280 = vpop.f32.mrf.mxu0
    %v281 = vadd.f32 %v67, %v280
    %v282 = vpop.f32.mrf.mxu0
    %283 = vmatprep.mubr.f32.mxu0 0.0
    %284 = vmatmul.mubr.f32.gmra.mxu0 %v83
    %v285 = vpop.f32.mrf.mxu0
    %v286 = vadd.f32 %v67, %v285
    %v287 = vpop.f32.mrf.mxu0
    %288 = vmatprep.mubr.f32.mxu0 0.0
    %289 = vmatmul.mubr.f32.gmra.mxu0 %v86
    %v290 = vpop.f32.mrf.mxu0
    %v291 = vadd.f32 %v67, %v290
    %v292 = vpop.f32.mrf.mxu0
    %293 = vmatprep.mubr.f32.mxu0 0.0
    %294 = vmatmul.mubr.f32.gmra.mxu0 %v89
    %v295 = vpop.f32.mrf.mxu0
    %v296 = vadd.f32 %v67, %v295
    %v297 = vpop.f32.mrf.mxu0
    %298 = vmatprep.mubr.f32.mxu0 0.0
    %299 = vmatmul.mubr.f32.gmra.mxu0 %v92
    %v300 = vpop.f32.mrf.mxu0
    %v301 = vadd.f32 %v67, %v300
    %v302 = vpop.f32.mrf.mxu0
    %303 = vmatprep.mubr.f32.mxu0 0.0
    %304 = vmatmul.mubr.f32.gmra.mxu0 %v95
    %v305 = vpop.f32.mrf.mxu0
    %v306 = vadd.f32 %v67, %v305
    %v307 = vpop.f32.mrf.mxu0
    %308 = vmatprep.mubr.f32.mxu0 0.0
    %309 = vmatmul.mubr.f32.gmra.mxu0 %v98
    %v310 = vpop.f32.mrf.mxu0
    %v311 = vadd.f32 %v67, %v310
    %v312 = vpop.f32.mrf.mxu0
    %313 = vmatprep.mubr.f32.mxu0 0.0
    %314 = vmatmul.mubr.f32.gmra.mxu0 %v101
    %v315 = vpop.f32.mrf.mxu0
    %v316 = vadd.f32 %v67, %v315
    %v317 = vpop.f32.mrf.mxu0
    %318 = vmatprep.mubr.f32.mxu0 0.0
    %319 = vmatmul.mubr.f32.gmra.mxu0 %v104
    %v320 = vpop.f32.mrf.mxu0
    %v321 = vadd.f32 %v67, %v320
    %v322 = vpop.f32.mrf.mxu0
    %323 = vmatprep.mubr.f32.mxu0 0.0
    %324 = vmatmul.mubr.f32.gmra.mxu0 %v107
    %v325 = vpop.f32.mrf.mxu0
    %v326 = vadd.f32 %v67, %v325
    %v327 = vpop.f32.mrf.mxu0
    %328 = vmatprep.mubr.f32.mxu0 0.0
    %329 = vmatmul.mubr.f32.gmra.mxu0 %v110
    %v330 = vpop.f32.mrf.mxu0
    %v331 = vadd.f32 %v67, %v330
    %v332 = vpop.f32.mrf.mxu0
    %333 = vmatprep.mubr.f32.mxu0 0.0
    %334 = vmatmul.mubr.f32.gmra.mxu0 %v113
    %v335 = vpop.f32.mrf.mxu0
    %v336 = vadd.f32 %v67, %v335
    %v337 = vpop.f32.mrf.mxu0
    %338 = vmatprep.mubr.f32.mxu0 0.0
    %339 = vmatmul.mubr.f32.gmra.mxu0 %v116
    %v340 = vpop.f32.mrf.mxu0
    %v341 = vadd.f32 %v67, %v340
    %v342 = vpop.f32.mrf.mxu0
    %343 = vmatprep.mubr.f32.mxu0 0.0
    %344 = vmatmul.mubr.f32.gmra.mxu0 %v119
    %v345 = vpop.f32.mrf.mxu0
    %v346 = vadd.f32 %v67, %v345
    %v347 = vpop.f32.mrf.mxu0
    %348 = vmatprep.mubr.f32.mxu0 0.0
    %349 = vmatmul.mubr.f32.gmra.mxu0 %v122
    %v350 = vpop.f32.mrf.mxu0
    %v351 = vadd.f32 %v67, %v350
    %v352 = vpop.f32.mrf.mxu0
    %353 = vmatprep.mubr.f32.mxu0 0.0
    %354 = vmatmul.mubr.f32.gmra.mxu0 %v125
    %v355 = vpop.f32.mrf.mxu0
    %v356 = vadd.f32 %v67, %v355
    %v357 = vpop.f32.mrf.mxu0
    %358 = vmatprep.mubr.f32.mxu0 0.0
    %359 = vmatmul.mubr.f32.gmra.mxu0 %v128
    %v360 = vpop.f32.mrf.mxu0
    %v361 = vadd.f32 %v67, %v360
    %v362 = vpop.f32.mrf.mxu0
    %363 = vmatprep.mubr.f32.mxu0 0.0
    %364 = vmatmul.mubr.f32.gmra.mxu0 %v131
    %v365 = vpop.f32.mrf.mxu0
    %v366 = vadd.f32 %v67, %v365
    %v367 = vpop.f32.mrf.mxu0
    %368 = vmatprep.mubr.f32.mxu0 0.0
    %369 = vmatmul.mubr.f32.gmra.mxu0 %v134
    %v370 = vpop.f32.mrf.mxu0
    %v371 = vadd.f32 %v67, %v370
    %v372 = vpop.f32.mrf.mxu0
    %373 = vmatprep.mubr.f32.mxu0 0.0
    %374 = vmatmul.mubr.f32.gmra.mxu0 %v137
    %v375 = vpop.f32.mrf.mxu0
    %v376 = vadd.f32 %v67, %v375
    %v377 = vpop.f32.mrf.mxu0
    %378 = vmatprep.mubr.f32.mxu0 0.0
    %379 = vmatmul.mubr.f32.gmra.mxu0 %v140
    %v380 = vpop.f32.mrf.mxu0
    %v381 = vadd.f32 %v67, %v380
    %v382 = vpop.f32.mrf.mxu0
    %383 = vmatprep.mubr.f32.mxu0 0.0
    %384 = vmatmul.mubr.f32.gmra.mxu0 %v143
    %v385 = vpop.f32.mrf.mxu0
    %v386 = vadd.f32 %v67, %v385
    %v387 = vpop.f32.mrf.mxu0
    %388 = vmatprep.mubr.f32.mxu0 0.0
    %389 = vmatmul.mubr.f32.gmra.mxu0 %v146
    %v390 = vpop.f32.mrf.mxu0
    %v391 = vadd.f32 %v67, %v390
    %v392 = vpop.f32.mrf.mxu0
    %393 = vmatprep.mubr.f32.mxu0 0.0
    %394 = vmatmul.mubr.f32.gmra.mxu0 %v149
    %v395 = vpop.f32.mrf.mxu0
    %v396 = vadd.f32 %v67, %v395
    %v397 = vpop.f32.mrf.mxu0
    %398 = vmatprep.mubr.f32.mxu0 0.0
    %399 = vmatmul.mubr.f32.gmra.mxu0 %v152
    %v400 = vpop.f32.mrf.mxu0
    %v401 = vadd.f32 %v67, %v400
    %v402 = vpop.f32.mrf.mxu0
    %403 = vmatprep.mubr.f32.mxu0 0.0
    %404 = vmatmul.mubr.f32.gmra.mxu0 %v155
    %v405 = vpop.f32.mrf.mxu0
    %v406 = vadd.f32 %v67, %v405
    %v407 = vpop.f32.mrf.mxu0
    %408 = vmatprep.mubr.f32.mxu0 0.0
    %409 = vmatmul.mubr.f32.gmra.mxu0 %v158
    %v410 = vpop.f32.mrf.mxu0
    %v411 = vadd.f32 %v67, %v410
    %v412 = vpop.f32.mrf.mxu0
    %413 = vmatprep.mubr.f32.mxu0 0.0
    %414 = vmatmul.mubr.f32.gmra.mxu0 %v161
    %v415 = vpop.f32.mrf.mxu0
    %v416 = vadd.f32 %v67, %v415
    %v417 = vpop.f32.mrf.mxu0
    %418 = vmatprep.mubr.f32.mxu0 0.0
    %419 = vmatmul.mubr.f32.gmra.mxu0 %v164
    %v420 = vpop.f32.mrf.mxu0
    %v421 = vadd.f32 %v67, %v420
    %v422 = vpop.f32.mrf.mxu0
    %423 = vmatprep.mubr.f32.mxu0 0.0
    %424 = vmatmul.mubr.f32.gmra.mxu0 %v167
    %v425 = vpop.f32.mrf.mxu0
    %v426 = vadd.f32 %v67, %v425
    %v427 = vpop.f32.mrf.mxu0
    %428 = vmatprep.mubr.f32.mxu0 0.0
    %429 = vmatmul.mubr.f32.gmra.mxu0 %v170
    %v430 = vpop.f32.mrf.mxu0
    %v431 = vadd.f32 %v67, %v430
    %v432 = vpop.f32.mrf.mxu0
    %433 = vmatprep.mubr.f32.mxu0 0.0
    %434 = vmatmul.mubr.f32.gmra.mxu0 %v173
    %v435 = vpop.f32.mrf.mxu0
    %v436 = vadd.f32 %v67, %v435
    %v437 = vpop.f32.mrf.mxu0
    %438 = vmatprep.mubr.f32.mxu0 0.0
    %439 = vmatmul.mubr.f32.gmra.mxu0 %v176
    %v440 = vpop.f32.mrf.mxu0
    %v441 = vadd.f32 %v67, %v440
    %v442 = vpop.f32.mrf.mxu0
    %443 = vmatprep.mubr.f32.mxu0 0.0
    %444 = vmatmul.mubr.f32.gmra.mxu0 %v179
    %v445 = vpop.f32.mrf.mxu0
    %v446 = vadd.f32 %v67, %v445
    %v447 = vpop.f32.mrf.mxu0
    %448 = vmatprep.mubr.f32.mxu0 0.0
    %449 = vmatmul.mubr.f32.gmra.mxu0 %v182
    %v450 = vpop.f32.mrf.mxu0
    %v451 = vadd.f32 %v67, %v450
    %v452 = vpop.f32.mrf.mxu0
    %453 = vmatprep.mubr.f32.mxu0 0.0
    %454 = vmatmul.mubr.f32.gmra.mxu0 %v185
    %v455 = vpop.f32.mrf.mxu0
    %v456 = vadd.f32 %v67, %v455
    %v457 = vpop.f32.mrf.mxu0
    %458 = vmatprep.mubr.f32.mxu0 0.0
    %459 = vmatmul.mubr.f32.gmra.mxu0 %v188
    %v460 = vpop.f32.mrf.mxu0
    %v461 = vadd.f32 %v67, %v460
    %v462 = vpop.f32.mrf.mxu0
    %463 = vmatprep.mubr.f32.mxu0 0.0
    %464 = vmatmul.mubr.f32.gmra.mxu0 %v191
    %v465 = vpop.f32.mrf.mxu0
    %v466 = vadd.f32 %v67, %v465
    %v467 = vpop.f32.mrf.mxu0
    %468 = vmatprep.mubr.f32.mxu0 0.0
    %469 = vmatmul.mubr.f32.gmra.mxu0 %v194
    %v470 = vpop.f32.mrf.mxu0
    %v471 = vadd.f32 %v67, %v470
    %v472 = vpop.f32.mrf.mxu0
    %473 = vmatprep.mubr.f32.mxu0 0.0
    %474 = vmatmul.mubr.f32.gmra.mxu0 %v197
    %v475 = vpop.f32.mrf.mxu0
    %v476 = vadd.f32 %v67, %v475
    %v477 = vpop.f32.mrf.mxu0
    %478 = vdwg.mxu0
    %479 = vst [vmem:[#allocation2] sm:$0xff] %v266
    %480 = vst [vmem:[#allocation2 + $0x8] sm:$0xff] %v271
    %481 = vst [vmem:[#allocation2 + $0x10] sm:$0xff] %v276
    %482 = vst [vmem:[#allocation2 + $0x18] sm:$0xff] %v281
    %483 = vst [vmem:[#allocation2 + $0x20] sm:$0xff] %v286
    %484 = vst [vmem:[#allocation2 + $0x28] sm:$0xff] %v291
    %485 = vst [vmem:[#allocation2 + $0x30] sm:$0xff] %v296
    %486 = vst [vmem:[#allocation2 + $0x38] sm:$0xff] %v301
    %487 = vst [vmem:[#allocation2 + $0x40] sm:$0xff] %v306
    %488 = vst [vmem:[#allocation2 + $0x48] sm:$0xff] %v311
    %489 = vst [vmem:[#allocation2 + $0x50] sm:$0xff] %v316
    %490 = vst [vmem:[#allocation2 + $0x58] sm:$0xff] %v321
    %491 = vst [vmem:[#allocation2 + $0x60] sm:$0xff] %v326
    %492 = vst [vmem:[#allocation2 + $0x68] sm:$0xff] %v331
    %493 = vst [vmem:[#allocation2 + $0x70] sm:$0xff] %v336
    %494 = vst [vmem:[#allocation2 + $0x78] sm:$0xff] %v341
    %495 = vst [vmem:[#allocation2 + $0x80] sm:$0xff] %v346
    %496 = vst [vmem:[#allocation2 + $0x88] sm:$0xff] %v351
    %497 = vst [vmem:[#allocation2 + $0x90] sm:$0xff] %v356
    %498 = vst [vmem:[#allocation2 + $0x98] sm:$0xff] %v361
    %499 = vst [vmem:[#allocation2 + $0xa0] sm:$0xff] %v366
    %500 = vst [vmem:[#allocation2 + $0xa8] sm:$0xff] %v371
    %501 = vst [vmem:[#allocation2 + $0xb0] sm:$0xff] %v376
    %502 = vst [vmem:[#allocation2 + $0xb8] sm:$0xff] %v381
    %503 = vst [vmem:[#allocation2 + $0xc0] sm:$0xff] %v386
    %504 = vst [vmem:[#allocation2 + $0xc8] sm:$0xff] %v391
    %505 = vst [vmem:[#allocation2 + $0xd0] sm:$0xff] %v396
    %506 = vst [vmem:[#allocation2 + $0xd8] sm:$0xff] %v401
    %507 = vst [vmem:[#allocation2 + $0xe0] sm:$0xff] %v406
    %508 = vst [vmem:[#allocation2 + $0xe8] sm:$0xff] %v411
    %509 = vst [vmem:[#allocation2 + $0xf0] sm:$0xff] %v416
    %510 = vst [vmem:[#allocation2 + $0xf8] sm:$0xff] %v421
    %511 = vst [vmem:[#allocation2 + $0x100] sm:$0xff] %v426
    %512 = vst [vmem:[#allocation2 + $0x108] sm:$0xff] %v431
    %513 = vst [vmem:[#allocation2 + $0x110] sm:$0xff] %v436
    %514 = vst [vmem:[#allocation2 + $0x118] sm:$0xff] %v441
    %515 = vst [vmem:[#allocation2 + $0x120] sm:$0xff] %v446
    %516 = vst [vmem:[#allocation2 + $0x128] sm:$0xff] %v451
    %517 = vst [vmem:[#allocation2 + $0x130] sm:$0xff] %v456
    %518 = vst [vmem:[#allocation2 + $0x138] sm:$0xff] %v461
    %519 = vst [vmem:[#allocation2 + $0x140] sm:$0xff] %v466
    %520 = vst [vmem:[#allocation2 + $0x148] sm:$0xff] %v471
    %521 = vst [vmem:[#allocation2 + $0x150] sm:$0xf] %v476
    // Predicated region
    $region14: #{tpu_custom_call.1} parent=1 // pred_check
      _
    $region15: #{tpu_custom_call.1} parent=1 // pred_check_branch
      %523 = sbr.rel (0) target = $region17
    $region16: #{tpu_custom_call.1} parent=1 // pred_region
      %s525 = ssub.s32 5504, 5504
      %526 = vsyncadd [#allocation3], %s525
      %s527 = sshll.u32 [#allocation2], 4
      %s528 = int_to_ptr.vmem [resolvable:$true] %s527
      %533 = dma.vmem_to_hbm [thread:$0]  %s528, 5504, %s3, [#allocation3], 128, 128, 8
    $region17: #{tpu_custom_call.1} parent=1 // pred_fallthru
      _
    // Predicated region
    $region18: #{tpu_custom_call.1} parent=1 // pred_check
      _
    $region19: #{tpu_custom_call.1} parent=1 // pred_check_branch
      %535 = sbr.rel (0) target = $region21
    $region20: #{tpu_custom_call.1} parent=1 // pred_region
      %536 = dma.done [#allocation3], 5504
    $region21: #{tpu_custom_call.1} parent=1 // pred_fallthru
      _
    %537 = vsyncpa [#allocation3], 1

</llo_original>
